<compile_context>
chip_gen: v5e
topology: v5e:2x2
jax: 0.10.0
libtpu: 0.0.40
codegen_flags: <defaults>
</compile_context>

<pallas_src>
import functools
import math

import numpy as np
import jax
import jax.numpy as jnp
from jax.experimental import pallas as pl
from jax.experimental.pallas import tpu as pltpu


def _make_resample_taps(orig_sr, new_sr, lowpass_filter_width=6, rolloff=0.99):
    """Deterministic re-derivation of torchaudio's sinc_interp_hann resample kernel."""
    g = math.gcd(int(orig_sr), int(new_sr))
    orig = int(orig_sr) // g
    new = int(new_sr) // g
    base = min(orig, new) * rolloff
    width = int(math.ceil(lowpass_filter_width * orig / base))
    idx = np.arange(-width, width + orig, dtype=np.float64) / orig              # (fw,)
    t = (np.arange(0, -new, -1, dtype=np.float64) / new)[:, None] + idx[None]   # (new, fw)
    t = np.clip(t * base, -lowpass_filter_width, lowpass_filter_width)
    window = np.cos(t * math.pi / lowpass_filter_width / 2.0) ** 2
    tpi = t * math.pi
    taps = np.where(tpi == 0.0, 1.0, np.sin(tpi) / np.where(tpi == 0.0, 1.0, tpi))
    taps = taps * window * (base / orig)
    return taps.astype(np.float32), width, orig, new


def _make_banded_taps(taps, orig, new, max_m, hb):
    """Banded tap matrix for the per-tile MXU matmul.

    W[(r*(hb+1)+h)*128 + j, p*128 + l] = taps[p, m*orig + r] with m = h*128 + j - l,
    zero outside 0 <= m <= max_m (or m*orig + r >= fw).  Returned split into bf16-exact
    hi / lo halves, shape (2, K, new*128), so hi@Whi + lo@Whi + hi@Wlo reproduces the
    f32 product independent of the MXU's native input precision.
    """
    fw = taps.shape[1]
    K = orig * (hb + 1) * 128
    CN = new * 128
    W = np.zeros((K, CN), np.float32)
    j = np.arange(128)[:, None]
    l = np.arange(128)[None, :]
    for r in range(orig):
        for h in range(hb + 1):
            m = h * 128 + j - l                      # (128, 128)
            k = m * orig + r
            valid = (m >= 0) & (m <= max_m) & (k < fw)
            kc = np.clip(k, 0, fw - 1)
            rows = slice((r * (hb + 1) + h) * 128, (r * (hb + 1) + h + 1) * 128)
            for p in range(new):
                W[rows, p * 128:(p + 1) * 128] = np.where(
                    valid, taps[p, kc], 0.0).astype(np.float32)
    w_hi = (W.view(np.uint32) & np.uint32(0xFFFF0000)).view(np.float32)  # bf16-exact
    w_lo = W - w_hi
    return np.stack([w_hi, w_lo]).astype(np.float32)


def _resample_kernel(ph_ref, w_ref, o_ref, *, orig, hb, S):
    """One tile (S*128 output frames) of the polyphase sinc-interp conv, on the MXU.

    ph_ref: (B, orig, S+hb, 128) f32  — polyphase input slab (halo rows included)
    w_ref:  (2, orig*(hb+1)*128, new*128) f32 — banded taps, hi/lo split (VMEM resident)
    o_ref:  (B, S, new*128) f32       — lane-dense output tile
    """
    B = o_ref.shape[0]
    CN = o_ref.shape[2]
    for b in range(B):
        acc = jnp.zeros((S, CN), jnp.float32)
        for r in range(orig):
            for h in range(hb + 1):
                row0 = (r * (hb + 1) + h) * 128
                part = ph_ref[b, r, h:h + S, :]            # (S, 128)
                w_hi = w_ref[0, row0:row0 + 128, :]        # (128, CN)
                w_lo = w_ref[1, row0:row0 + 128, :]
                p_hi = part.astype(jnp.bfloat16).astype(jnp.float32)
                p_lo = part - p_hi
                # bf16x3: f32-accurate whether or not the MXU truncates its inputs.
                acc = acc + jnp.dot(p_hi, w_hi, preferred_element_type=jnp.float32)
                acc = acc + jnp.dot(p_lo, w_hi, preferred_element_type=jnp.float32)
                acc = acc + jnp.dot(p_hi, w_lo, preferred_element_type=jnp.float32)
        o_ref[b, :, :] = acc


def resample_audio(wave, orig_sr=32000, new_sr=16000, sublane_blocks=8):
    """Forward pass of ResampleAudio: identity if rates match, else sinc resample."""
    if orig_sr == new_sr:
        return wave
    wave = wave.astype(jnp.float32)
    B, L = wave.shape
    taps_np, width, orig, new = _make_resample_taps(orig_sr, new_sr)
    fw = taps_np.shape[1]
    max_m = (fw - 1) // orig                 # tap offsets per polyphase branch
    hb = (127 + max_m) // 128                # halo rows per tile
    S = sublane_blocks                       # 128-frame blocks per tile (sublane dim)
    tile = S * 128                           # output frames per grid step

    # TODO(synk): for large orig/new reduction factors (e.g. 44.1kHz<->48kHz) the dense
    # banded tap matrix becomes too large; fall back to a per-tap / scalar-prefetch path.

    target_len = int(math.ceil(new * L / orig))
    n_q = -(-target_len // new)              # conv frames actually needed
    n_tiles = max(1, -(-n_q // tile))
    n_q_pad = n_tiles * tile
    nb_total = n_q_pad // 128 + hb           # 128-blocks per polyphase branch (+halo)
    phase_len = nb_total * 128
    pad_total = orig * phase_len

    # Zero-pad like torchaudio (width zeros left, plenty of zeros right), then
    # polyphase-split and 128-block time: ph_blocks[b,r,nb,l] = padded[b, (nb*128+l)*orig + r].
    padded = jnp.zeros((B, pad_total), jnp.float32).at[:, width:width + L].set(wave)
    phases = padded.reshape(B, phase_len, orig).transpose(0, 2, 1)
    ph_blocks = phases.reshape(B, orig, nb_total, 128)

    # Per-tile slabs with duplicated halo rows: each grid step is one contiguous,
    # lane-aligned DMA (VMEM use is O(tile); only (S+hb)/S ~ 12.5% extra HBM for S=8).
    rows = np.arange(n_tiles)[:, None] * S + np.arange(S + hb)[None, :]
    ph_tiles = jnp.take(ph_blocks, jnp.asarray(rows.reshape(-1)), axis=2)
    ph_tiles = ph_tiles.reshape(B, orig, n_tiles, S + hb, 128)

    w = jnp.asarray(_make_banded_taps(taps_np, orig, new, max_m, hb))   # (2, K, new*128)
    K, CN = w.shape[1], w.shape[2]

    kernel = functools.partial(_resample_kernel, orig=orig, hb=hb, S=S)
    out = pl.pallas_call(
        kernel,
        out_shape=jax.ShapeDtypeStruct((B, n_tiles * S, CN), jnp.float32),
        grid=(n_tiles,),
        in_specs=[
            pl.BlockSpec((B, orig, None, S + hb, 128), lambda i: (0, 0, i, 0, 0)),
            pl.BlockSpec((2, K, CN), lambda i: (0, 0, 0)),   # taps: loaded once, resident
        ],
        out_specs=pl.BlockSpec((B, S, CN), lambda i: (0, i, 0)),
        compiler_params=pltpu.CompilerParams(dimension_semantics=("parallel",)),
    )(ph_tiles, w)

    # out[b, nb, p*128 + l] -> y[b, (nb*128 + l)*new + p]  (torchaudio interleave), crop.
    y = out.reshape(B, n_tiles * S, new, 128).transpose(0, 1, 3, 2)
    y = y.reshape(B, n_q_pad * new)
    return y[:, :target_len]


def _resample_reference(wave_np, orig_sr=32000, new_sr=16000):
    """Pure-numpy replica of torchaudio Resample for correctness checking."""
    taps, width, orig, new = _make_resample_taps(orig_sr, new_sr)
    B, L = wave_np.shape
    padded = np.pad(wave_np, ((0, 0), (width, width + orig))).astype(np.float32)
    fw = taps.shape[1]
    n_q = (padded.shape[1] - fw) // orig + 1
    out = np.zeros((B, new, n_q), np.float32)
    for q in range(n_q):
        win = padded[:, q * orig:q * orig + fw]        # (B, fw)
        out[:, :, q] = win @ taps.T
    out = out.transpose(0, 2, 1).reshape(B, -1)
    return out[:, :int(math.ceil(new * L / orig))]


if __name__ == "__main__":
    key = jax.random.PRNGKey(0)
    B, L = 2, 512                       # small (batch, time) waveform
    wave = jax.random.normal(key, (B, L), dtype=jnp.float32)

    out = resample_audio(wave, orig_sr=32000, new_sr=16000)
    out = jax.block_until_ready(out)

    ref = _resample_reference(np.asarray(wave), 32000, 16000)
    assert out.shape == ref.shape == (B, L // 2), (out.shape, ref.shape)
    # bf16x3 hi/lo split keeps the MXU path ~f32-accurate (residual ~1e-5).
    np.testing.assert_allclose(np.asarray(out), ref, rtol=2e-4, atol=2e-4)
    print("KERNEL_OK")
</pallas_src>

<mosaic_0001>
module attributes {stable_mosaic.version = 11 : i64} {
  func.func @_resample_kernel(%arg0: i32, %arg1: memref<2x2x1x9x128xf32, #tpu.memory_space<vmem>>, %arg2: memref<2x512x128xf32, #tpu.memory_space<vmem>>, %arg3: memref<2x8x128xf32, #tpu.memory_space<vmem>>) attributes {dimension_semantics = [#tpu.dimension_semantics<parallel>], iteration_bounds = array<i64: 1>, scalar_prefetch = 0 : i64, scratch_operands = 0 : i64, tpu.core_type = #tpu.core_type<tc>, window_params = [{transform_indices = @transform_0, window_bounds = array<i64: 2, 2, 1, 9, 128>}, {pipeline_mode = #tpu.pipeline_mode<synchronous>, transform_indices = @transform_1, window_bounds = array<i64: 2, 512, 128>}, {transform_indices = @transform_2, window_bounds = array<i64: 2, 8, 128>}]} {
    %cst = arith.constant 0.000000e+00 : f32
    %0 = vector.broadcast %cst : f32 to vector<8x128xf32>
    %c0 = arith.constant 0 : index
    %c0_0 = arith.constant 0 : index
    %c0_1 = arith.constant 0 : index
    %c0_2 = arith.constant 0 : index
    %c0_3 = arith.constant 0 : index
    %1 = vector.load %arg1[%c0, %c0_0, %c0_1, %c0_2, %c0_3] : memref<2x2x1x9x128xf32, #tpu.memory_space<vmem>>, vector<1x1x1x8x128xf32>
    %2 = vector.shape_cast %1 : vector<1x1x1x8x128xf32> to vector<8x128xf32>
    %c0_4 = arith.constant 0 : index
    %c0_5 = arith.constant 0 : index
    %c0_6 = arith.constant 0 : index
    %3 = vector.load %arg2[%c0_4, %c0_5, %c0_6] : memref<2x512x128xf32, #tpu.memory_space<vmem>>, vector<1x128x128xf32>
    %4 = vector.shape_cast %3 : vector<1x128x128xf32> to vector<128x128xf32>
    %c1 = arith.constant 1 : index
    %c0_7 = arith.constant 0 : index
    %c0_8 = arith.constant 0 : index
    %5 = vector.load %arg2[%c1, %c0_7, %c0_8] : memref<2x512x128xf32, #tpu.memory_space<vmem>>, vector<1x128x128xf32>
    %6 = vector.shape_cast %5 : vector<1x128x128xf32> to vector<128x128xf32>
    %7 = arith.truncf %2 : vector<8x128xf32> to vector<8x128xbf16>
    %8 = arith.extf %7 : vector<8x128xbf16> to vector<8x128xf32>
    %9 = arith.subf %2, %8 : vector<8x128xf32>
    %cst_9 = arith.constant dense<0.000000e+00> : vector<8x128xf32>
    %10 = tpu.matmul %8, %4, %cst_9 {dimension_numbers = #tpu.dot_dimension_numbers<[1], [0], [0], [1], [0, 0, 1, 1], [], []>} : vector<8x128xf32>, vector<128x128xf32>, vector<8x128xf32> -> vector<8x128xf32>
    %11 = arith.addf %0, %10 : vector<8x128xf32>
    %cst_10 = arith.constant dense<0.000000e+00> : vector<8x128xf32>
    %12 = tpu.matmul %9, %4, %cst_10 {dimension_numbers = #tpu.dot_dimension_numbers<[1], [0], [0], [1], [0, 0, 1, 1], [], []>} : vector<8x128xf32>, vector<128x128xf32>, vector<8x128xf32> -> vector<8x128xf32>
    %13 = arith.addf %11, %12 : vector<8x128xf32>
    %cst_11 = arith.constant dense<0.000000e+00> : vector<8x128xf32>
    %14 = tpu.matmul %8, %6, %cst_11 {dimension_numbers = #tpu.dot_dimension_numbers<[1], [0], [0], [1], [0, 0, 1, 1], [], []>} : vector<8x128xf32>, vector<128x128xf32>, vector<8x128xf32> -> vector<8x128xf32>
    %15 = arith.addf %13, %14 : vector<8x128xf32>
    %c0_12 = arith.constant 0 : index
    %c0_13 = arith.constant 0 : index
    %c0_14 = arith.constant 0 : index
    %c1_15 = arith.constant 1 : index
    %c0_16 = arith.constant 0 : index
    %16 = vector.load %arg1[%c0_12, %c0_13, %c0_14, %c1_15, %c0_16] : memref<2x2x1x9x128xf32, #tpu.memory_space<vmem>>, vector<1x1x1x8x128xf32>
    %17 = vector.shape_cast %16 : vector<1x1x1x8x128xf32> to vector<8x128xf32>
    %c0_17 = arith.constant 0 : index
    %c128 = arith.constant 128 : index
    %c0_18 = arith.constant 0 : index
    %18 = vector.load %arg2[%c0_17, %c128, %c0_18] : memref<2x512x128xf32, #tpu.memory_space<vmem>>, vector<1x128x128xf32>
    %19 = vector.shape_cast %18 : vector<1x128x128xf32> to vector<128x128xf32>
    %c1_19 = arith.constant 1 : index
    %c128_20 = arith.constant 128 : index
    %c0_21 = arith.constant 0 : index
    %20 = vector.load %arg2[%c1_19, %c128_20, %c0_21] : memref<2x512x128xf32, #tpu.memory_space<vmem>>, vector<1x128x128xf32>
    %21 = vector.shape_cast %20 : vector<1x128x128xf32> to vector<128x128xf32>
    %22 = arith.truncf %17 : vector<8x128xf32> to vector<8x128xbf16>
    %23 = arith.extf %22 : vector<8x128xbf16> to vector<8x128xf32>
    %24 = arith.subf %17, %23 : vector<8x128xf32>
    %cst_22 = arith.constant dense<0.000000e+00> : vector<8x128xf32>
    %25 = tpu.matmul %23, %19, %cst_22 {dimension_numbers = #tpu.dot_dimension_numbers<[1], [0], [0], [1], [0, 0, 1, 1], [], []>} : vector<8x128xf32>, vector<128x128xf32>, vector<8x128xf32> -> vector<8x128xf32>
    %26 = arith.addf %15, %25 : vector<8x128xf32>
    %cst_23 = arith.constant dense<0.000000e+00> : vector<8x128xf32>
    %27 = tpu.matmul %24, %19, %cst_23 {dimension_numbers = #tpu.dot_dimension_numbers<[1], [0], [0], [1], [0, 0, 1, 1], [], []>} : vector<8x128xf32>, vector<128x128xf32>, vector<8x128xf32> -> vector<8x128xf32>
    %28 = arith.addf %26, %27 : vector<8x128xf32>
    %cst_24 = arith.constant dense<0.000000e+00> : vector<8x128xf32>
    %29 = tpu.matmul %23, %21, %cst_24 {dimension_numbers = #tpu.dot_dimension_numbers<[1], [0], [0], [1], [0, 0, 1, 1], [], []>} : vector<8x128xf32>, vector<128x128xf32>, vector<8x128xf32> -> vector<8x128xf32>
    %30 = arith.addf %28, %29 : vector<8x128xf32>
    %c0_25 = arith.constant 0 : index
    %c1_26 = arith.constant 1 : index
    %c0_27 = arith.constant 0 : index
    %c0_28 = arith.constant 0 : index
    %c0_29 = arith.constant 0 : index
    %31 = vector.load %arg1[%c0_25, %c1_26, %c0_27, %c0_28, %c0_29] : memref<2x2x1x9x128xf32, #tpu.memory_space<vmem>>, vector<1x1x1x8x128xf32>
    %32 = vector.shape_cast %31 : vector<1x1x1x8x128xf32> to vector<8x128xf32>
    %c0_30 = arith.constant 0 : index
    %c256 = arith.constant 256 : index
    %c0_31 = arith.constant 0 : index
    %33 = vector.load %arg2[%c0_30, %c256, %c0_31] : memref<2x512x128xf32, #tpu.memory_space<vmem>>, vector<1x128x128xf32>
    %34 = vector.shape_cast %33 : vector<1x128x128xf32> to vector<128x128xf32>
    %c1_32 = arith.constant 1 : index
    %c256_33 = arith.constant 256 : index
    %c0_34 = arith.constant 0 : index
    %35 = vector.load %arg2[%c1_32, %c256_33, %c0_34] : memref<2x512x128xf32, #tpu.memory_space<vmem>>, vector<1x128x128xf32>
    %36 = vector.shape_cast %35 : vector<1x128x128xf32> to vector<128x128xf32>
    %37 = arith.truncf %32 : vector<8x128xf32> to vector<8x128xbf16>
    %38 = arith.extf %37 : vector<8x128xbf16> to vector<8x128xf32>
    %39 = arith.subf %32, %38 : vector<8x128xf32>
    %cst_35 = arith.constant dense<0.000000e+00> : vector<8x128xf32>
    %40 = tpu.matmul %38, %34, %cst_35 {dimension_numbers = #tpu.dot_dimension_numbers<[1], [0], [0], [1], [0, 0, 1, 1], [], []>} : vector<8x128xf32>, vector<128x128xf32>, vector<8x128xf32> -> vector<8x128xf32>
    %41 = arith.addf %30, %40 : vector<8x128xf32>
    %cst_36 = arith.constant dense<0.000000e+00> : vector<8x128xf32>
    %42 = tpu.matmul %39, %34, %cst_36 {dimension_numbers = #tpu.dot_dimension_numbers<[1], [0], [0], [1], [0, 0, 1, 1], [], []>} : vector<8x128xf32>, vector<128x128xf32>, vector<8x128xf32> -> vector<8x128xf32>
    %43 = arith.addf %41, %42 : vector<8x128xf32>
    %cst_37 = arith.constant dense<0.000000e+00> : vector<8x128xf32>
    %44 = tpu.matmul %38, %36, %cst_37 {dimension_numbers = #tpu.dot_dimension_numbers<[1], [0], [0], [1], [0, 0, 1, 1], [], []>} : vector<8x128xf32>, vector<128x128xf32>, vector<8x128xf32> -> vector<8x128xf32>
    %45 = arith.addf %43, %44 : vector<8x128xf32>
    %c0_38 = arith.constant 0 : index
    %c1_39 = arith.constant 1 : index
    %c0_40 = arith.constant 0 : index
    %c1_41 = arith.constant 1 : index
    %c0_42 = arith.constant 0 : index
    %46 = vector.load %arg1[%c0_38, %c1_39, %c0_40, %c1_41, %c0_42] : memref<2x2x1x9x128xf32, #tpu.memory_space<vmem>>, vector<1x1x1x8x128xf32>
    %47 = vector.shape_cast %46 : vector<1x1x1x8x128xf32> to vector<8x128xf32>
    %c0_43 = arith.constant 0 : index
    %c384 = arith.constant 384 : index
    %c0_44 = arith.constant 0 : index
    %48 = vector.load %arg2[%c0_43, %c384, %c0_44] : memref<2x512x128xf32, #tpu.memory_space<vmem>>, vector<1x128x128xf32>
    %49 = vector.shape_cast %48 : vector<1x128x128xf32> to vector<128x128xf32>
    %c1_45 = arith.constant 1 : index
    %c384_46 = arith.constant 384 : index
    %c0_47 = arith.constant 0 : index
    %50 = vector.load %arg2[%c1_45, %c384_46, %c0_47] : memref<2x512x128xf32, #tpu.memory_space<vmem>>, vector<1x128x128xf32>
    %51 = vector.shape_cast %50 : vector<1x128x128xf32> to vector<128x128xf32>
    %52 = arith.truncf %47 : vector<8x128xf32> to vector<8x128xbf16>
    %53 = arith.extf %52 : vector<8x128xbf16> to vector<8x128xf32>
    %54 = arith.subf %47, %53 : vector<8x128xf32>
    %cst_48 = arith.constant dense<0.000000e+00> : vector<8x128xf32>
    %55 = tpu.matmul %53, %49, %cst_48 {dimension_numbers = #tpu.dot_dimension_numbers<[1], [0], [0], [1], [0, 0, 1, 1], [], []>} : vector<8x128xf32>, vector<128x128xf32>, vector<8x128xf32> -> vector<8x128xf32>
    %56 = arith.addf %45, %55 : vector<8x128xf32>
    %cst_49 = arith.constant dense<0.000000e+00> : vector<8x128xf32>
    %57 = tpu.matmul %54, %49, %cst_49 {dimension_numbers = #tpu.dot_dimension_numbers<[1], [0], [0], [1], [0, 0, 1, 1], [], []>} : vector<8x128xf32>, vector<128x128xf32>, vector<8x128xf32> -> vector<8x128xf32>
    %58 = arith.addf %56, %57 : vector<8x128xf32>
    %cst_50 = arith.constant dense<0.000000e+00> : vector<8x128xf32>
    %59 = tpu.matmul %53, %51, %cst_50 {dimension_numbers = #tpu.dot_dimension_numbers<[1], [0], [0], [1], [0, 0, 1, 1], [], []>} : vector<8x128xf32>, vector<128x128xf32>, vector<8x128xf32> -> vector<8x128xf32>
    %60 = arith.addf %58, %59 : vector<8x128xf32>
    %c0_51 = arith.constant 0 : index
    %c0_52 = arith.constant 0 : index
    %c0_53 = arith.constant 0 : index
    %61 = vector.load %arg3[%c0_51, %c0_52, %c0_53] : memref<2x8x128xf32, #tpu.memory_space<vmem>>, vector<1x8x128xf32>
    %62 = vector.shape_cast %61 : vector<1x8x128xf32> to vector<8x128xf32>
    %63 = vector.shape_cast %60 : vector<8x128xf32> to vector<1x8x128xf32>
    tpu.vector_store %arg3[%c0_51, %c0_52, %c0_53], %63 {strides = array<i32>} : memref<2x8x128xf32, #tpu.memory_space<vmem>>, vector<1x8x128xf32>,
    %cst_54 = arith.constant 0.000000e+00 : f32
    %64 = vector.broadcast %cst_54 : f32 to vector<8x128xf32>
    %c1_55 = arith.constant 1 : index
    %c0_56 = arith.constant 0 : index
    %c0_57 = arith.constant 0 : index
    %c0_58 = arith.constant 0 : index
    %c0_59 = arith.constant 0 : index
    %65 = vector.load %arg1[%c1_55, %c0_56, %c0_57, %c0_58, %c0_59] : memref<2x2x1x9x128xf32, #tpu.memory_space<vmem>>, vector<1x1x1x8x128xf32>
    %66 = vector.shape_cast %65 : vector<1x1x1x8x128xf32> to vector<8x128xf32>
    %c0_60 = arith.constant 0 : index
    %c0_61 = arith.constant 0 : index
    %c0_62 = arith.constant 0 : index
    %67 = vector.load %arg2[%c0_60, %c0_61, %c0_62] : memref<2x512x128xf32, #tpu.memory_space<vmem>>, vector<1x128x128xf32>
    %68 = vector.shape_cast %67 : vector<1x128x128xf32> to vector<128x128xf32>
    %c1_63 = arith.constant 1 : index
    %c0_64 = arith.constant 0 : index
    %c0_65 = arith.constant 0 : index
    %69 = vector.load %arg2[%c1_63, %c0_64, %c0_65] : memref<2x512x128xf32, #tpu.memory_space<vmem>>, vector<1x128x128xf32>
    %70 = vector.shape_cast %69 : vector<1x128x128xf32> to vector<128x128xf32>
    %71 = arith.truncf %66 : vector<8x128xf32> to vector<8x128xbf16>
    %72 = arith.extf %71 : vector<8x128xbf16> to vector<8x128xf32>
    %73 = arith.subf %66, %72 : vector<8x128xf32>
    %cst_66 = arith.constant dense<0.000000e+00> : vector<8x128xf32>
    %74 = tpu.matmul %72, %68, %cst_66 {dimension_numbers = #tpu.dot_dimension_numbers<[1], [0], [0], [1], [0, 0, 1, 1], [], []>} : vector<8x128xf32>, vector<128x128xf32>, vector<8x128xf32> -> vector<8x128xf32>
    %75 = arith.addf %64, %74 : vector<8x128xf32>
    %cst_67 = arith.constant dense<0.000000e+00> : vector<8x128xf32>
    %76 = tpu.matmul %73, %68, %cst_67 {dimension_numbers = #tpu.dot_dimension_numbers<[1], [0], [0], [1], [0, 0, 1, 1], [], []>} : vector<8x128xf32>, vector<128x128xf32>, vector<8x128xf32> -> vector<8x128xf32>
    %77 = arith.addf %75, %76 : vector<8x128xf32>
    %cst_68 = arith.constant dense<0.000000e+00> : vector<8x128xf32>
    %78 = tpu.matmul %72, %70, %cst_68 {dimension_numbers = #tpu.dot_dimension_numbers<[1], [0], [0], [1], [0, 0, 1, 1], [], []>} : vector<8x128xf32>, vector<128x128xf32>, vector<8x128xf32> -> vector<8x128xf32>
    %79 = arith.addf %77, %78 : vector<8x128xf32>
    %c1_69 = arith.constant 1 : index
    %c0_70 = arith.constant 0 : index
    %c0_71 = arith.constant 0 : index
    %c1_72 = arith.constant 1 : index
    %c0_73 = arith.constant 0 : index
    %80 = vector.load %arg1[%c1_69, %c0_70, %c0_71, %c1_72, %c0_73] : memref<2x2x1x9x128xf32, #tpu.memory_space<vmem>>, vector<1x1x1x8x128xf32>
    %81 = vector.shape_cast %80 : vector<1x1x1x8x128xf32> to vector<8x128xf32>
    %c0_74 = arith.constant 0 : index
    %c128_75 = arith.constant 128 : index
    %c0_76 = arith.constant 0 : index
    %82 = vector.load %arg2[%c0_74, %c128_75, %c0_76] : memref<2x512x128xf32, #tpu.memory_space<vmem>>, vector<1x128x128xf32>
    %83 = vector.shape_cast %82 : vector<1x128x128xf32> to vector<128x128xf32>
    %c1_77 = arith.constant 1 : index
    %c128_78 = arith.constant 128 : index
    %c0_79 = arith.constant 0 : index
    %84 = vector.load %arg2[%c1_77, %c128_78, %c0_79] : memref<2x512x128xf32, #tpu.memory_space<vmem>>, vector<1x128x128xf32>
    %85 = vector.shape_cast %84 : vector<1x128x128xf32> to vector<128x128xf32>
    %86 = arith.truncf %81 : vector<8x128xf32> to vector<8x128xbf16>
    %87 = arith.extf %86 : vector<8x128xbf16> to vector<8x128xf32>
    %88 = arith.subf %81, %87 : vector<8x128xf32>
    %cst_80 = arith.constant dense<0.000000e+00> : vector<8x128xf32>
    %89 = tpu.matmul %87, %83, %cst_80 {dimension_numbers = #tpu.dot_dimension_numbers<[1], [0], [0], [1], [0, 0, 1, 1], [], []>} : vector<8x128xf32>, vector<128x128xf32>, vector<8x128xf32> -> vector<8x128xf32>
    %90 = arith.addf %79, %89 : vector<8x128xf32>
    %cst_81 = arith.constant dense<0.000000e+00> : vector<8x128xf32>
    %91 = tpu.matmul %88, %83, %cst_81 {dimension_numbers = #tpu.dot_dimension_numbers<[1], [0], [0], [1], [0, 0, 1, 1], [], []>} : vector<8x128xf32>, vector<128x128xf32>, vector<8x128xf32> -> vector<8x128xf32>
    %92 = arith.addf %90, %91 : vector<8x128xf32>
    %cst_82 = arith.constant dense<0.000000e+00> : vector<8x128xf32>
    %93 = tpu.matmul %87, %85, %cst_82 {dimension_numbers = #tpu.dot_dimension_numbers<[1], [0], [0], [1], [0, 0, 1, 1], [], []>} : vector<8x128xf32>, vector<128x128xf32>, vector<8x128xf32> -> vector<8x128xf32>
    %94 = arith.addf %92, %93 : vector<8x128xf32>
    %c1_83 = arith.constant 1 : index
    %c1_84 = arith.constant 1 : index
    %c0_85 = arith.constant 0 : index
    %c0_86 = arith.constant 0 : index
    %c0_87 = arith.constant 0 : index
    %95 = vector.load %arg1[%c1_83, %c1_84, %c0_85, %c0_86, %c0_87] : memref<2x2x1x9x128xf32, #tpu.memory_space<vmem>>, vector<1x1x1x8x128xf32>
    %96 = vector.shape_cast %95 : vector<1x1x1x8x128xf32> to vector<8x128xf32>
    %c0_88 = arith.constant 0 : index
    %c256_89 = arith.constant 256 : index
    %c0_90 = arith.constant 0 : index
    %97 = vector.load %arg2[%c0_88, %c256_89, %c0_90] : memref<2x512x128xf32, #tpu.memory_space<vmem>>, vector<1x128x128xf32>
    %98 = vector.shape_cast %97 : vector<1x128x128xf32> to vector<128x128xf32>
    %c1_91 = arith.constant 1 : index
    %c256_92 = arith.constant 256 : index
    %c0_93 = arith.constant 0 : index
    %99 = vector.load %arg2[%c1_91, %c256_92, %c0_93] : memref<2x512x128xf32, #tpu.memory_space<vmem>>, vector<1x128x128xf32>
    %100 = vector.shape_cast %99 : vector<1x128x128xf32> to vector<128x128xf32>
    %101 = arith.truncf %96 : vector<8x128xf32> to vector<8x128xbf16>
    %102 = arith.extf %101 : vector<8x128xbf16> to vector<8x128xf32>
    %103 = arith.subf %96, %102 : vector<8x128xf32>
    %cst_94 = arith.constant dense<0.000000e+00> : vector<8x128xf32>
    %104 = tpu.matmul %102, %98, %cst_94 {dimension_numbers = #tpu.dot_dimension_numbers<[1], [0], [0], [1], [0, 0, 1, 1], [], []>} : vector<8x128xf32>, vector<128x128xf32>, vector<8x128xf32> -> vector<8x128xf32>
    %105 = arith.addf %94, %104 : vector<8x128xf32>
    %cst_95 = arith.constant dense<0.000000e+00> : vector<8x128xf32>
    %106 = tpu.matmul %103, %98, %cst_95 {dimension_numbers = #tpu.dot_dimension_numbers<[1], [0], [0], [1], [0, 0, 1, 1], [], []>} : vector<8x128xf32>, vector<128x128xf32>, vector<8x128xf32> -> vector<8x128xf32>
    %107 = arith.addf %105, %106 : vector<8x128xf32>
    %cst_96 = arith.constant dense<0.000000e+00> : vector<8x128xf32>
    %108 = tpu.matmul %102, %100, %cst_96 {dimension_numbers = #tpu.dot_dimension_numbers<[1], [0], [0], [1], [0, 0, 1, 1], [], []>} : vector<8x128xf32>, vector<128x128xf32>, vector<8x128xf32> -> vector<8x128xf32>
    %109 = arith.addf %107, %108 : vector<8x128xf32>
    %c1_97 = arith.constant 1 : index
    %c1_98 = arith.constant 1 : index
    %c0_99 = arith.constant 0 : index
    %c1_100 = arith.constant 1 : index
    %c0_101 = arith.constant 0 : index
    %110 = vector.load %arg1[%c1_97, %c1_98, %c0_99, %c1_100, %c0_101] : memref<2x2x1x9x128xf32, #tpu.memory_space<vmem>>, vector<1x1x1x8x128xf32>
    %111 = vector.shape_cast %110 : vector<1x1x1x8x128xf32> to vector<8x128xf32>
    %c0_102 = arith.constant 0 : index
    %c384_103 = arith.constant 384 : index
    %c0_104 = arith.constant 0 : index
    %112 = vector.load %arg2[%c0_102, %c384_103, %c0_104] : memref<2x512x128xf32, #tpu.memory_space<vmem>>, vector<1x128x128xf32>
    %113 = vector.shape_cast %112 : vector<1x128x128xf32> to vector<128x128xf32>
    %c1_105 = arith.constant 1 : index
    %c384_106 = arith.constant 384 : index
    %c0_107 = arith.constant 0 : index
    %114 = vector.load %arg2[%c1_105, %c384_106, %c0_107] : memref<2x512x128xf32, #tpu.memory_space<vmem>>, vector<1x128x128xf32>
    %115 = vector.shape_cast %114 : vector<1x128x128xf32> to vector<128x128xf32>
    %116 = arith.truncf %111 : vector<8x128xf32> to vector<8x128xbf16>
    %117 = arith.extf %116 : vector<8x128xbf16> to vector<8x128xf32>
    %118 = arith.subf %111, %117 : vector<8x128xf32>
    %cst_108 = arith.constant dense<0.000000e+00> : vector<8x128xf32>
    %119 = tpu.matmul %117, %113, %cst_108 {dimension_numbers = #tpu.dot_dimension_numbers<[1], [0], [0], [1], [0, 0, 1, 1], [], []>} : vector<8x128xf32>, vector<128x128xf32>, vector<8x128xf32> -> vector<8x128xf32>
    %120 = arith.addf %109, %119 : vector<8x128xf32>
    %cst_109 = arith.constant dense<0.000000e+00> : vector<8x128xf32>
    %121 = tpu.matmul %118, %113, %cst_109 {dimension_numbers = #tpu.dot_dimension_numbers<[1], [0], [0], [1], [0, 0, 1, 1], [], []>} : vector<8x128xf32>, vector<128x128xf32>, vector<8x128xf32> -> vector<8x128xf32>
    %122 = arith.addf %120, %121 : vector<8x128xf32>
    %cst_110 = arith.constant dense<0.000000e+00> : vector<8x128xf32>
    %123 = tpu.matmul %117, %115, %cst_110 {dimension_numbers = #tpu.dot_dimension_numbers<[1], [0], [0], [1], [0, 0, 1, 1], [], []>} : vector<8x128xf32>, vector<128x128xf32>, vector<8x128xf32> -> vector<8x128xf32>
    %124 = arith.addf %122, %123 : vector<8x128xf32>
    %c1_111 = arith.constant 1 : index
    %c0_112 = arith.constant 0 : index
    %c0_113 = arith.constant 0 : index
    %125 = vector.load %arg3[%c1_111, %c0_112, %c0_113] : memref<2x8x128xf32, #tpu.memory_space<vmem>>, vector<1x8x128xf32>
    %126 = vector.shape_cast %125 : vector<1x8x128xf32> to vector<8x128xf32>
    %127 = vector.shape_cast %124 : vector<8x128xf32> to vector<1x8x128xf32>
    tpu.vector_store %arg3[%c1_111, %c0_112, %c0_113], %127 {strides = array<i32>} : memref<2x8x128xf32, #tpu.memory_space<vmem>>, vector<1x8x128xf32>,
    return
  }
  func.func @transform_0(%arg0: i32) -> (i32, i32, i32, i32, i32) {
    %c0_i32 = arith.constant 0 : i32
    %c0_i32_0 = arith.constant 0 : i32
    %c0_i32_1 = arith.constant 0 : i32
    %c0_i32_2 = arith.constant 0 : i32
    %c0_i32_3 = arith.constant 0 : i32
    return %c0_i32, %c0_i32_0, %arg0, %c0_i32_1, %c0_i32_2 : i32, i32, i32, i32, i32
  }
  func.func @transform_1(%arg0: i32) -> (i32, i32, i32) {
    %c0_i32 = arith.constant 0 : i32
    %c0_i32_0 = arith.constant 0 : i32
    %c0_i32_1 = arith.constant 0 : i32
    %c0_i32_2 = arith.constant 0 : i32
    return %c0_i32, %c0_i32_0, %c0_i32_1 : i32, i32, i32
  }
  func.func @transform_2(%arg0: i32) -> (i32, i32, i32) {
    %c0_i32 = arith.constant 0 : i32
    %c0_i32_0 = arith.constant 0 : i32
    %c0_i32_1 = arith.constant 0 : i32
    return %c0_i32, %arg0, %c0_i32_0 : i32, i32, i32
  }
}

</mosaic_0001>

<llo_original>
// kernel: tpu_custom_call.1
$region0: #{tpu_custom_call.1}
  #allocation0 [shape = 'u32[]', space=smem, size = 0x4, offset = 0x4, fixed_abs, tag = 'smem constant byte address 0x4 - core index']
  #allocation1 [shape = 'u32[72,128]{1,0:T(1,128)}', space=vmem, size = 0x9000, scoped, tag = 'internal scratch']
  %s0 = inlined_call_operand.vmem [shape: f32[2,2,1,9,128], index: 0, kind: input, shape index: {}]
  %s1 = inlined_call_operand.hbm [shape: f32[2,512,128], index: 1, kind: input, shape index: {}]
  %s2 = inlined_call_operand.hbm [shape: f32[2,8,128], index: 2, kind: output, shape index: {}]
  %s3 = sld [smem:[#allocation0]]
  $region22: #{tpu_custom_call.1} parent=0
    _
  %s5 = ssub.s32 1, %s3
  %s6 = scalar_select 0, %s5, %s3
  $region1: #{tpu_custom_call.1} parent=0
    #allocation2 [shape = 'u8[524288]{0}', space=vmem, size = 0x80000, scoped, tag = 'input window, operand 1, single buffered']
    #allocation3 [shape = 's32[1]{0}', space=sflag, size = 0x4, scoped, tag = 'scoped memory for tpu_custom_call.1']
    #allocation4 [shape = 's32[1]{0}', space=sflag, size = 0x4, scoped, tag = 'scoped memory for tpu_custom_call.1']
    #allocation5 [shape = 'u8[8192]{0}', space=vmem, size = 0x2000, scoped, tag = 'output window, operand 0, single buffered']
    %7 = vsyncpa [#allocation3], 0
    %8 = vsyncpa [#allocation4], 0
    // Predicated region
    $region2: #{tpu_custom_call.1} parent=1 // pred_check
      _
    $region3: #{tpu_custom_call.1} parent=1 // pred_check_branch
      %10 = sbr.rel (0) target = $region5
    $region4: #{tpu_custom_call.1} parent=1 // pred_region
      _
    $region5: #{tpu_custom_call.1} parent=1 // pred_fallthru
      _
    // Predicated region
    $region6: #{tpu_custom_call.1} parent=1 // pred_check
      _
    $region7: #{tpu_custom_call.1} parent=1 // pred_check_branch
      %12 = sbr.rel (0) target = $region9
    $region8: #{tpu_custom_call.1} parent=1 // pred_region
      %14 = vsyncadd [#allocation3], 0
      %s15 = sshll.u32 %s1, 4
      %s16 = int_to_ptr.hbm [resolvable:$true] %s15
      %s17 = sshll.u32 [#allocation2], 4
      %s18 = int_to_ptr.vmem [resolvable:$true] %s17
      %23 = dma.hbm_to_vmem [thread:$0]  %s16, 16384, %s18, [#allocation3], 128, 128, 8
    $region9: #{tpu_custom_call.1} parent=1 // pred_fallthru
      _
    // Predicated region
    $region10: #{tpu_custom_call.1} parent=1 // pred_check
      _
    $region11: #{tpu_custom_call.1} parent=1 // pred_check_branch
      %25 = sbr.rel (0) target = $region13
    $region12: #{tpu_custom_call.1} parent=1 // pred_region
      %27 = dma.done [#allocation3], 16384
    $region13: #{tpu_custom_call.1} parent=1 // pred_fallthru
      _
    %v28 = vld [vmem:[%s0] sm:$0xff]
    %v29 = vld [vmem:[#allocation2] sm:$0xff]
    %v30 = vld [vmem:[#allocation2 + $0x8] sm:$0xff]
    %v31 = vld [vmem:[#allocation2 + $0x10] sm:$0xff]
    %v32 = vld [vmem:[#allocation2 + $0x18] sm:$0xff]
    %v33 = vld [vmem:[#allocation2 + $0x20] sm:$0xff]
    %v34 = vld [vmem:[#allocation2 + $0x28] sm:$0xff]
    %v35 = vld [vmem:[#allocation2 + $0x30] sm:$0xff]
    %v36 = vld [vmem:[#allocation2 + $0x38] sm:$0xff]
    %v37 = vld [vmem:[#allocation2 + $0x40] sm:$0xff]
    %v38 = vld [vmem:[#allocation2 + $0x48] sm:$0xff]
    %v39 = vld [vmem:[#allocation2 + $0x50] sm:$0xff]
    %v40 = vld [vmem:[#allocation2 + $0x58] sm:$0xff]
    %v41 = vld [vmem:[#allocation2 + $0x60] sm:$0xff]
    %v42 = vld [vmem:[#allocation2 + $0x68] sm:$0xff]
    %v43 = vld [vmem:[#allocation2 + $0x70] sm:$0xff]
    %v44 = vld [vmem:[#allocation2 + $0x78] sm:$0xff]
    %s45 = scalar_lea.vmem [#allocation2], 512
    %v46 = vld [vmem:[%s45] sm:$0xff]
    %v47 = vld [vmem:[%s45 + $0x8] sm:$0xff]
    %v48 = vld [vmem:[%s45 + $0x10] sm:$0xff]
    %v49 = vld [vmem:[%s45 + $0x18] sm:$0xff]
    %v50 = vld [vmem:[%s45 + $0x20] sm:$0xff]
    %v51 = vld [vmem:[%s45 + $0x28] sm:$0xff]
    %v52 = vld [vmem:[%s45 + $0x30] sm:$0xff]
    %v53 = vld [vmem:[%s45 + $0x38] sm:$0xff]
    %v54 = vld [vmem:[%s45 + $0x40] sm:$0xff]
    %v55 = vld [vmem:[%s45 + $0x48] sm:$0xff]
    %v56 = vld [vmem:[%s45 + $0x50] sm:$0xff]
    %v57 = vld [vmem:[%s45 + $0x58] sm:$0xff]
    %v58 = vld [vmem:[%s45 + $0x60] sm:$0xff]
    %v59 = vld [vmem:[%s45 + $0x68] sm:$0xff]
    %v60 = vld [vmem:[%s45 + $0x70] sm:$0xff]
    %v61 = vld [vmem:[%s45 + $0x78] sm:$0xff]
    %v62 = vpack.c.bf16 %v28, %v28
    %v63 = vunpack.c.l.bf16 %v62
    %v64 = vsub.f32 %v28, %v63
    %65 = vmatpush.msra.mxu0 %v44
    %66 = vmatpush.msra.mxu0 %v43
    %67 = vmatpush.msra.mxu0 %v42
    %68 = vmatpush.msra.mxu0 %v41
    %69 = vmatpush.msra.mxu0 %v40
    %70 = vmatpush.msra.mxu0 %v39
    %71 = vmatpush.msra.mxu0 %v38
    %72 = vmatpush.msra.mxu0 %v37
    %73 = vmatpush.msra.mxu0 %v36
    %74 = vmatpush.msra.mxu0 %v35
    %75 = vmatpush.msra.mxu0 %v34
    %76 = vmatpush.msra.mxu0 %v33
    %77 = vmatpush.msra.mxu0 %v32
    %78 = vmatpush.msra.mxu0 %v31
    %79 = vmatpush.msra.mxu0 %v30
    %80 = vmatpush.msra.mxu0 %v29
    %81 = vmatmul.f32.gmra.mxu0 %v64
    %v82 = vpop.f32.mrf.mxu0
    %v83 = vadd.f32 0.0, %v82
    %84 = vdwg.mxu0
    %85 = vmatpush.msra.mxu0 %v44
    %86 = vmatpush.msra.mxu0 %v43
    %87 = vmatpush.msra.mxu0 %v42
    %88 = vmatpush.msra.mxu0 %v41
    %89 = vmatpush.msra.mxu0 %v40
    %90 = vmatpush.msra.mxu0 %v39
    %91 = vmatpush.msra.mxu0 %v38
    %92 = vmatpush.msra.mxu0 %v37
    %93 = vmatpush.msra.mxu0 %v36
    %94 = vmatpush.msra.mxu0 %v35
    %95 = vmatpush.msra.mxu0 %v34
    %96 = vmatpush.msra.mxu0 %v33
    %97 = vmatpush.msra.mxu0 %v32
    %98 = vmatpush.msra.mxu0 %v31
    %99 = vmatpush.msra.mxu0 %v30
    %100 = vmatpush.msra.mxu0 %v29
    %101 = vmatmul.f32.gmra.mxu0 %v63
    %v102 = vpop.f32.mrf.mxu0
    %v103 = vadd.f32 %v83, %v102
    %104 = vdwg.mxu0
    %105 = vmatpush.msra.mxu0 %v61
    %106 = vmatpush.msra.mxu0 %v60
    %107 = vmatpush.msra.mxu0 %v59
    %108 = vmatpush.msra.mxu0 %v58
    %109 = vmatpush.msra.mxu0 %v57
    %110 = vmatpush.msra.mxu0 %v56
    %111 = vmatpush.msra.mxu0 %v55
    %112 = vmatpush.msra.mxu0 %v54
    %113 = vmatpush.msra.mxu0 %v53
    %114 = vmatpush.msra.mxu0 %v52
    %115 = vmatpush.msra.mxu0 %v51
    %116 = vmatpush.msra.mxu0 %v50
    %117 = vmatpush.msra.mxu0 %v49
    %118 = vmatpush.msra.mxu0 %v48
    %119 = vmatpush.msra.mxu0 %v47
    %120 = vmatpush.msra.mxu0 %v46
    %121 = vmatmul.f32.gmra.mxu0 %v63
    %v122 = vpop.f32.mrf.mxu0
    %v123 = vadd.f32 0.0, %v122
    %124 = vdwg.mxu0
    %v125 = vadd.f32 %v103, %v123
    %v126 = vld [vmem:[%s0 + $0x1] sm:$0xff]
    %v127 = vld [vmem:[#allocation2 + $0x80] sm:$0xff]
    %v128 = vld [vmem:[#allocation2 + $0x88] sm:$0xff]
    %v129 = vld [vmem:[#allocation2 + $0x90] sm:$0xff]
    %v130 = vld [vmem:[#allocation2 + $0x98] sm:$0xff]
    %v131 = vld [vmem:[#allocation2 + $0xa0] sm:$0xff]
    %v132 = vld [vmem:[#allocation2 + $0xa8] sm:$0xff]
    %v133 = vld [vmem:[#allocation2 + $0xb0] sm:$0xff]
    %v134 = vld [vmem:[#allocation2 + $0xb8] sm:$0xff]
    %v135 = vld [vmem:[#allocation2 + $0xc0] sm:$0xff]
    %v136 = vld [vmem:[#allocation2 + $0xc8] sm:$0xff]
    %v137 = vld [vmem:[#allocation2 + $0xd0] sm:$0xff]
    %v138 = vld [vmem:[#allocation2 + $0xd8] sm:$0xff]
    %v139 = vld [vmem:[#allocation2 + $0xe0] sm:$0xff]
    %v140 = vld [vmem:[#allocation2 + $0xe8] sm:$0xff]
    %v141 = vld [vmem:[#allocation2 + $0xf0] sm:$0xff]
    %v142 = vld [vmem:[#allocation2 + $0xf8] sm:$0xff]
    %v143 = vld [vmem:[%s45 + $0x80] sm:$0xff]
    %v144 = vld [vmem:[%s45 + $0x88] sm:$0xff]
    %v145 = vld [vmem:[%s45 + $0x90] sm:$0xff]
    %v146 = vld [vmem:[%s45 + $0x98] sm:$0xff]
    %v147 = vld [vmem:[%s45 + $0xa0] sm:$0xff]
    %v148 = vld [vmem:[%s45 + $0xa8] sm:$0xff]
    %v149 = vld [vmem:[%s45 + $0xb0] sm:$0xff]
    %v150 = vld [vmem:[%s45 + $0xb8] sm:$0xff]
    %v151 = vld [vmem:[%s45 + $0xc0] sm:$0xff]
    %v152 = vld [vmem:[%s45 + $0xc8] sm:$0xff]
    %v153 = vld [vmem:[%s45 + $0xd0] sm:$0xff]
    %v154 = vld [vmem:[%s45 + $0xd8] sm:$0xff]
    %v155 = vld [vmem:[%s45 + $0xe0] sm:$0xff]
    %v156 = vld [vmem:[%s45 + $0xe8] sm:$0xff]
    %v157 = vld [vmem:[%s45 + $0xf0] sm:$0xff]
    %v158 = vld [vmem:[%s45 + $0xf8] sm:$0xff]
    %v159 = vpack.c.bf16 %v126, %v126
    %v160 = vunpack.c.l.bf16 %v159
    %v161 = vsub.f32 %v126, %v160
    %162 = vmatpush.msra.mxu0 %v142
    %163 = vmatpush.msra.mxu0 %v141
    %164 = vmatpush.msra.mxu0 %v140
    %165 = vmatpush.msra.mxu0 %v139
    %166 = vmatpush.msra.mxu0 %v138
    %167 = vmatpush.msra.mxu0 %v137
    %168 = vmatpush.msra.mxu0 %v136
    %169 = vmatpush.msra.mxu0 %v135
    %170 = vmatpush.msra.mxu0 %v134
    %171 = vmatpush.msra.mxu0 %v133
    %172 = vmatpush.msra.mxu0 %v132
    %173 = vmatpush.msra.mxu0 %v131
    %174 = vmatpush.msra.mxu0 %v130
    %175 = vmatpush.msra.mxu0 %v129
    %176 = vmatpush.msra.mxu0 %v128
    %177 = vmatpush.msra.mxu0 %v127
    %178 = vmatmul.f32.gmra.mxu0 %v160
    %v179 = vpop.f32.mrf.mxu0
    %v180 = vadd.f32 0.0, %v179
    %181 = vdwg.mxu0
    %v182 = vadd.f32 %v125, %v180
    %183 = vmatpush.msra.mxu0 %v142
    %184 = vmatpush.msra.mxu0 %v141
    %185 = vmatpush.msra.mxu0 %v140
    %186 = vmatpush.msra.mxu0 %v139
    %187 = vmatpush.msra.mxu0 %v138
    %188 = vmatpush.msra.mxu0 %v137
    %189 = vmatpush.msra.mxu0 %v136
    %190 = vmatpush.msra.mxu0 %v135
    %191 = vmatpush.msra.mxu0 %v134
    %192 = vmatpush.msra.mxu0 %v133
    %193 = vmatpush.msra.mxu0 %v132
    %194 = vmatpush.msra.mxu0 %v131
    %195 = vmatpush.msra.mxu0 %v130
    %196 = vmatpush.msra.mxu0 %v129
    %197 = vmatpush.msra.mxu0 %v128
    %198 = vmatpush.msra.mxu0 %v127
    %199 = vmatmul.f32.gmra.mxu0 %v161
    %v200 = vpop.f32.mrf.mxu0
    %v201 = vadd.f32 0.0, %v200
    %202 = vdwg.mxu0
    %v203 = vadd.f32 %v182, %v201
    %204 = vmatpush.msra.mxu0 %v158
    %205 = vmatpush.msra.mxu0 %v157
    %206 = vmatpush.msra.mxu0 %v156
    %207 = vmatpush.msra.mxu0 %v155
    %208 = vmatpush.msra.mxu0 %v154
    %209 = vmatpush.msra.mxu0 %v153
    %210 = vmatpush.msra.mxu0 %v152
    %211 = vmatpush.msra.mxu0 %v151
    %212 = vmatpush.msra.mxu0 %v150
    %213 = vmatpush.msra.mxu0 %v149
    %214 = vmatpush.msra.mxu0 %v148
    %215 = vmatpush.msra.mxu0 %v147
    %216 = vmatpush.msra.mxu0 %v146
    %217 = vmatpush.msra.mxu0 %v145
    %218 = vmatpush.msra.mxu0 %v144
    %219 = vmatpush.msra.mxu0 %v143
    %220 = vmatmul.f32.gmra.mxu0 %v160
    %v221 = vpop.f32.mrf.mxu0
    %v222 = vadd.f32 0.0, %v221
    %223 = vdwg.mxu0
    %v224 = vadd.f32 %v203, %v222
    %s225 = scalar_lea.vmem %s0, 16
    %v226 = vld [vmem:[%s225] sm:$0xff]
    %v227 = vld [vmem:[#allocation2 + $0x100] sm:$0xff]
    %v228 = vld [vmem:[#allocation2 + $0x108] sm:$0xff]
    %v229 = vld [vmem:[#allocation2 + $0x110] sm:$0xff]
    %v230 = vld [vmem:[#allocation2 + $0x118] sm:$0xff]
    %v231 = vld [vmem:[#allocation2 + $0x120] sm:$0xff]
    %v232 = vld [vmem:[#allocation2 + $0x128] sm:$0xff]
    %v233 = vld [vmem:[#allocation2 + $0x130] sm:$0xff]
    %v234 = vld [vmem:[#allocation2 + $0x138] sm:$0xff]
    %v235 = vld [vmem:[#allocation2 + $0x140] sm:$0xff]
    %v236 = vld [vmem:[#allocation2 + $0x148] sm:$0xff]
    %v237 = vld [vmem:[#allocation2 + $0x150] sm:$0xff]
    %v238 = vld [vmem:[#allocation2 + $0x158] sm:$0xff]
    %v239 = vld [vmem:[#allocation2 + $0x160] sm:$0xff]
    %v240 = vld [vmem:[#allocation2 + $0x168] sm:$0xff]
    %v241 = vld [vmem:[#allocation2 + $0x170] sm:$0xff]
    %v242 = vld [vmem:[#allocation2 + $0x178] sm:$0xff]
    %v243 = vld [vmem:[%s45 + $0x100] sm:$0xff]
    %v244 = vld [vmem:[%s45 + $0x108] sm:$0xff]
    %v245 = vld [vmem:[%s45 + $0x110] sm:$0xff]
    %v246 = vld [vmem:[%s45 + $0x118] sm:$0xff]
    %v247 = vld [vmem:[%s45 + $0x120] sm:$0xff]
    %v248 = vld [vmem:[%s45 + $0x128] sm:$0xff]
    %v249 = vld [vmem:[%s45 + $0x130] sm:$0xff]
    %v250 = vld [vmem:[%s45 + $0x138] sm:$0xff]
    %v251 = vld [vmem:[%s45 + $0x140] sm:$0xff]
    %v252 = vld [vmem:[%s45 + $0x148] sm:$0xff]
    %v253 = vld [vmem:[%s45 + $0x150] sm:$0xff]
    %v254 = vld [vmem:[%s45 + $0x158] sm:$0xff]
    %v255 = vld [vmem:[%s45 + $0x160] sm:$0xff]
    %v256 = vld [vmem:[%s45 + $0x168] sm:$0xff]
    %v257 = vld [vmem:[%s45 + $0x170] sm:$0xff]
    %v258 = vld [vmem:[%s45 + $0x178] sm:$0xff]
    %v259 = vpack.c.bf16 %v226, %v226
    %v260 = vunpack.c.l.bf16 %v259
    %v261 = vsub.f32 %v226, %v260
    %262 = vmatpush.msra.mxu0 %v242
    %263 = vmatpush.msra.mxu0 %v241
    %264 = vmatpush.msra.mxu0 %v240
    %265 = vmatpush.msra.mxu0 %v239
    %266 = vmatpush.msra.mxu0 %v238
    %267 = vmatpush.msra.mxu0 %v237
    %268 = vmatpush.msra.mxu0 %v236
    %269 = vmatpush.msra.mxu0 %v235
    %270 = vmatpush.msra.mxu0 %v234
    %271 = vmatpush.msra.mxu0 %v233
    %272 = vmatpush.msra.mxu0 %v232
    %273 = vmatpush.msra.mxu0 %v231
    %274 = vmatpush.msra.mxu0 %v230
    %275 = vmatpush.msra.mxu0 %v229
    %276 = vmatpush.msra.mxu0 %v228
    %277 = vmatpush.msra.mxu0 %v227
    %278 = vmatmul.f32.gmra.mxu0 %v260
    %v279 = vpop.f32.mrf.mxu0
    %v280 = vadd.f32 0.0, %v279
    %281 = vdwg.mxu0
    %v282 = vadd.f32 %v224, %v280
    %283 = vmatpush.msra.mxu0 %v242
    %284 = vmatpush.msra.mxu0 %v241
    %285 = vmatpush.msra.mxu0 %v240
    %286 = vmatpush.msra.mxu0 %v239
    %287 = vmatpush.msra.mxu0 %v238
    %288 = vmatpush.msra.mxu0 %v237
    %289 = vmatpush.msra.mxu0 %v236
    %290 = vmatpush.msra.mxu0 %v235
    %291 = vmatpush.msra.mxu0 %v234
    %292 = vmatpush.msra.mxu0 %v233
    %293 = vmatpush.msra.mxu0 %v232
    %294 = vmatpush.msra.mxu0 %v231
    %295 = vmatpush.msra.mxu0 %v230
    %296 = vmatpush.msra.mxu0 %v229
    %297 = vmatpush.msra.mxu0 %v228
    %298 = vmatpush.msra.mxu0 %v227
    %299 = vmatmul.f32.gmra.mxu0 %v261
    %v300 = vpop.f32.mrf.mxu0
    %v301 = vadd.f32 0.0, %v300
    %302 = vdwg.mxu0
    %v303 = vadd.f32 %v282, %v301
    %304 = vmatpush.msra.mxu0 %v258
    %305 = vmatpush.msra.mxu0 %v257
    %306 = vmatpush.msra.mxu0 %v256
    %307 = vmatpush.msra.mxu0 %v255
    %308 = vmatpush.msra.mxu0 %v254
    %309 = vmatpush.msra.mxu0 %v253
    %310 = vmatpush.msra.mxu0 %v252
    %311 = vmatpush.msra.mxu0 %v251
    %312 = vmatpush.msra.mxu0 %v250
    %313 = vmatpush.msra.mxu0 %v249
    %314 = vmatpush.msra.mxu0 %v248
    %315 = vmatpush.msra.mxu0 %v247
    %316 = vmatpush.msra.mxu0 %v246
    %317 = vmatpush.msra.mxu0 %v245
    %318 = vmatpush.msra.mxu0 %v244
    %319 = vmatpush.msra.mxu0 %v243
    %320 = vmatmul.f32.gmra.mxu0 %v260
    %v321 = vpop.f32.mrf.mxu0
    %v322 = vadd.f32 0.0, %v321
    %323 = vdwg.mxu0
    %v324 = vadd.f32 %v303, %v322
    %v325 = vld [vmem:[%s225 + $0x1] sm:$0xff]
    %v326 = vld [vmem:[#allocation2 + $0x180] sm:$0xff]
    %v327 = vld [vmem:[#allocation2 + $0x188] sm:$0xff]
    %v328 = vld [vmem:[#allocation2 + $0x190] sm:$0xff]
    %v329 = vld [vmem:[#allocation2 + $0x198] sm:$0xff]
    %v330 = vld [vmem:[#allocation2 + $0x1a0] sm:$0xff]
    %v331 = vld [vmem:[#allocation2 + $0x1a8] sm:$0xff]
    %v332 = vld [vmem:[#allocation2 + $0x1b0] sm:$0xff]
    %v333 = vld [vmem:[#allocation2 + $0x1b8] sm:$0xff]
    %v334 = vld [vmem:[#allocation2 + $0x1c0] sm:$0xff]
    %v335 = vld [vmem:[#allocation2 + $0x1c8] sm:$0xff]
    %v336 = vld [vmem:[#allocation2 + $0x1d0] sm:$0xff]
    %v337 = vld [vmem:[#allocation2 + $0x1d8] sm:$0xff]
    %v338 = vld [vmem:[#allocation2 + $0x1e0] sm:$0xff]
    %v339 = vld [vmem:[#allocation2 + $0x1e8] sm:$0xff]
    %v340 = vld [vmem:[#allocation2 + $0x1f0] sm:$0xff]
    %v341 = vld [vmem:[#allocation2 + $0x1f8] sm:$0xff]
    %v342 = vld [vmem:[%s45 + $0x180] sm:$0xff]
    %v343 = vld [vmem:[%s45 + $0x188] sm:$0xff]
    %v344 = vld [vmem:[%s45 + $0x190] sm:$0xff]
    %v345 = vld [vmem:[%s45 + $0x198] sm:$0xff]
    %v346 = vld [vmem:[%s45 + $0x1a0] sm:$0xff]
    %v347 = vld [vmem:[%s45 + $0x1a8] sm:$0xff]
    %v348 = vld [vmem:[%s45 + $0x1b0] sm:$0xff]
    %v349 = vld [vmem:[%s45 + $0x1b8] sm:$0xff]
    %v350 = vld [vmem:[%s45 + $0x1c0] sm:$0xff]
    %v351 = vld [vmem:[%s45 + $0x1c8] sm:$0xff]
    %v352 = vld [vmem:[%s45 + $0x1d0] sm:$0xff]
    %v353 = vld [vmem:[%s45 + $0x1d8] sm:$0xff]
    %v354 = vld [vmem:[%s45 + $0x1e0] sm:$0xff]
    %v355 = vld [vmem:[%s45 + $0x1e8] sm:$0xff]
    %v356 = vld [vmem:[%s45 + $0x1f0] sm:$0xff]
    %v357 = vld [vmem:[%s45 + $0x1f8] sm:$0xff]
    %v358 = vpack.c.bf16 %v325, %v325
    %v359 = vunpack.c.l.bf16 %v358
    %v360 = vsub.f32 %v325, %v359
    %361 = vmatpush.msra.mxu0 %v341
    %362 = vmatpush.msra.mxu0 %v340
    %363 = vmatpush.msra.mxu0 %v339
    %364 = vmatpush.msra.mxu0 %v338
    %365 = vmatpush.msra.mxu0 %v337
    %366 = vmatpush.msra.mxu0 %v336
    %367 = vmatpush.msra.mxu0 %v335
    %368 = vmatpush.msra.mxu0 %v334
    %369 = vmatpush.msra.mxu0 %v333
    %370 = vmatpush.msra.mxu0 %v332
    %371 = vmatpush.msra.mxu0 %v331
    %372 = vmatpush.msra.mxu0 %v330
    %373 = vmatpush.msra.mxu0 %v329
    %374 = vmatpush.msra.mxu0 %v328
    %375 = vmatpush.msra.mxu0 %v327
    %376 = vmatpush.msra.mxu0 %v326
    %377 = vmatmul.f32.gmra.mxu0 %v359
    %v378 = vpop.f32.mrf.mxu0
    %v379 = vadd.f32 0.0, %v378
    %380 = vdwg.mxu0
    %v381 = vadd.f32 %v324, %v379
    %382 = vmatpush.msra.mxu0 %v341
    %383 = vmatpush.msra.mxu0 %v340
    %384 = vmatpush.msra.mxu0 %v339
    %385 = vmatpush.msra.mxu0 %v338
    %386 = vmatpush.msra.mxu0 %v337
    %387 = vmatpush.msra.mxu0 %v336
    %388 = vmatpush.msra.mxu0 %v335
    %389 = vmatpush.msra.mxu0 %v334
    %390 = vmatpush.msra.mxu0 %v333
    %391 = vmatpush.msra.mxu0 %v332
    %392 = vmatpush.msra.mxu0 %v331
    %393 = vmatpush.msra.mxu0 %v330
    %394 = vmatpush.msra.mxu0 %v329
    %395 = vmatpush.msra.mxu0 %v328
    %396 = vmatpush.msra.mxu0 %v327
    %397 = vmatpush.msra.mxu0 %v326
    %398 = vmatmul.f32.gmra.mxu0 %v360
    %v399 = vpop.f32.mrf.mxu0
    %v400 = vadd.f32 0.0, %v399
    %401 = vdwg.mxu0
    %v402 = vadd.f32 %v381, %v400
    %403 = vmatpush.msra.mxu0 %v357
    %404 = vmatpush.msra.mxu0 %v356
    %405 = vmatpush.msra.mxu0 %v355
    %406 = vmatpush.msra.mxu0 %v354
    %407 = vmatpush.msra.mxu0 %v353
    %408 = vmatpush.msra.mxu0 %v352
    %409 = vmatpush.msra.mxu0 %v351
    %410 = vmatpush.msra.mxu0 %v350
    %411 = vmatpush.msra.mxu0 %v349
    %412 = vmatpush.msra.mxu0 %v348
    %413 = vmatpush.msra.mxu0 %v347
    %414 = vmatpush.msra.mxu0 %v346
    %415 = vmatpush.msra.mxu0 %v345
    %416 = vmatpush.msra.mxu0 %v344
    %417 = vmatpush.msra.mxu0 %v343
    %418 = vmatpush.msra.mxu0 %v342
    %419 = vmatmul.f32.gmra.mxu0 %v359
    %v420 = vpop.f32.mrf.mxu0
    %v421 = vadd.f32 0.0, %v420
    %422 = vdwg.mxu0
    %v423 = vadd.f32 %v402, %v421
    %424 = vst [vmem:[#allocation5] sm:$0xff] %v423
    %s425 = scalar_lea.vmem %s0, 32
    %v426 = vld [vmem:[%s425] sm:$0xff]
    %v427 = vld [vmem:[#allocation2] sm:$0xff]
    %v428 = vld [vmem:[#allocation2 + $0x8] sm:$0xff]
    %v429 = vld [vmem:[#allocation2 + $0x10] sm:$0xff]
    %v430 = vld [vmem:[#allocation2 + $0x18] sm:$0xff]
    %v431 = vld [vmem:[#allocation2 + $0x20] sm:$0xff]
    %v432 = vld [vmem:[#allocation2 + $0x28] sm:$0xff]
    %v433 = vld [vmem:[#allocation2 + $0x30] sm:$0xff]
    %v434 = vld [vmem:[#allocation2 + $0x38] sm:$0xff]
    %v435 = vld [vmem:[#allocation2 + $0x40] sm:$0xff]
    %v436 = vld [vmem:[#allocation2 + $0x48] sm:$0xff]
    %v437 = vld [vmem:[#allocation2 + $0x50] sm:$0xff]
    %v438 = vld [vmem:[#allocation2 + $0x58] sm:$0xff]
    %v439 = vld [vmem:[#allocation2 + $0x60] sm:$0xff]
    %v440 = vld [vmem:[#allocation2 + $0x68] sm:$0xff]
    %v441 = vld [vmem:[#allocation2 + $0x70] sm:$0xff]
    %v442 = vld [vmem:[#allocation2 + $0x78] sm:$0xff]
    %v443 = vld [vmem:[%s45] sm:$0xff]
    %v444 = vld [vmem:[%s45 + $0x8] sm:$0xff]
    %v445 = vld [vmem:[%s45 + $0x10] sm:$0xff]
    %v446 = vld [vmem:[%s45 + $0x18] sm:$0xff]
    %v447 = vld [vmem:[%s45 + $0x20] sm:$0xff]
    %v448 = vld [vmem:[%s45 + $0x28] sm:$0xff]
    %v449 = vld [vmem:[%s45 + $0x30] sm:$0xff]
    %v450 = vld [vmem:[%s45 + $0x38] sm:$0xff]
    %v451 = vld [vmem:[%s45 + $0x40] sm:$0xff]
    %v452 = vld [vmem:[%s45 + $0x48] sm:$0xff]
    %v453 = vld [vmem:[%s45 + $0x50] sm:$0xff]
    %v454 = vld [vmem:[%s45 + $0x58] sm:$0xff]
    %v455 = vld [vmem:[%s45 + $0x60] sm:$0xff]
    %v456 = vld [vmem:[%s45 + $0x68] sm:$0xff]
    %v457 = vld [vmem:[%s45 + $0x70] sm:$0xff]
    %v458 = vld [vmem:[%s45 + $0x78] sm:$0xff]
    %v459 = vpack.c.bf16 %v426, %v426
    %v460 = vunpack.c.l.bf16 %v459
    %v461 = vsub.f32 %v426, %v460
    %462 = vmatpush.msra.mxu0 %v442
    %463 = vmatpush.msra.mxu0 %v441
    %464 = vmatpush.msra.mxu0 %v440
    %465 = vmatpush.msra.mxu0 %v439
    %466 = vmatpush.msra.mxu0 %v438
    %467 = vmatpush.msra.mxu0 %v437
    %468 = vmatpush.msra.mxu0 %v436
    %469 = vmatpush.msra.mxu0 %v435
    %470 = vmatpush.msra.mxu0 %v434
    %471 = vmatpush.msra.mxu0 %v433
    %472 = vmatpush.msra.mxu0 %v432
    %473 = vmatpush.msra.mxu0 %v431
    %474 = vmatpush.msra.mxu0 %v430
    %475 = vmatpush.msra.mxu0 %v429
    %476 = vmatpush.msra.mxu0 %v428
    %477 = vmatpush.msra.mxu0 %v427
    %478 = vmatmul.f32.gmra.mxu0 %v461
    %v479 = vpop.f32.mrf.mxu0
    %v480 = vadd.f32 0.0, %v479
    %481 = vdwg.mxu0
    %482 = vmatpush.msra.mxu0 %v442
    %483 = vmatpush.msra.mxu0 %v441
    %484 = vmatpush.msra.mxu0 %v440
    %485 = vmatpush.msra.mxu0 %v439
    %486 = vmatpush.msra.mxu0 %v438
    %487 = vmatpush.msra.mxu0 %v437
    %488 = vmatpush.msra.mxu0 %v436
    %489 = vmatpush.msra.mxu0 %v435
    %490 = vmatpush.msra.mxu0 %v434
    %491 = vmatpush.msra.mxu0 %v433
    %492 = vmatpush.msra.mxu0 %v432
    %493 = vmatpush.msra.mxu0 %v431
    %494 = vmatpush.msra.mxu0 %v430
    %495 = vmatpush.msra.mxu0 %v429
    %496 = vmatpush.msra.mxu0 %v428
    %497 = vmatpush.msra.mxu0 %v427
    %498 = vmatmul.f32.gmra.mxu0 %v460
    %v499 = vpop.f32.mrf.mxu0
    %v500 = vadd.f32 %v480, %v499
    %501 = vdwg.mxu0
    %502 = vmatpush.msra.mxu0 %v458
    %503 = vmatpush.msra.mxu0 %v457
    %504 = vmatpush.msra.mxu0 %v456
    %505 = vmatpush.msra.mxu0 %v455
    %506 = vmatpush.msra.mxu0 %v454
    %507 = vmatpush.msra.mxu0 %v453
    %508 = vmatpush.msra.mxu0 %v452
    %509 = vmatpush.msra.mxu0 %v451
    %510 = vmatpush.msra.mxu0 %v450
    %511 = vmatpush.msra.mxu0 %v449
    %512 = vmatpush.msra.mxu0 %v448
    %513 = vmatpush.msra.mxu0 %v447
    %514 = vmatpush.msra.mxu0 %v446
    %515 = vmatpush.msra.mxu0 %v445
    %516 = vmatpush.msra.mxu0 %v444
    %517 = vmatpush.msra.mxu0 %v443
    %518 = vmatmul.f32.gmra.mxu0 %v460
    %v519 = vpop.f32.mrf.mxu0
    %v520 = vadd.f32 0.0, %v519
    %521 = vdwg.mxu0
    %v522 = vadd.f32 %v500, %v520
    %v523 = vld [vmem:[%s425 + $0x1] sm:$0xff]
    %v524 = vld [vmem:[#allocation2 + $0x80] sm:$0xff]
    %v525 = vld [vmem:[#allocation2 + $0x88] sm:$0xff]
    %v526 = vld [vmem:[#allocation2 + $0x90] sm:$0xff]
    %v527 = vld [vmem:[#allocation2 + $0x98] sm:$0xff]
    %v528 = vld [vmem:[#allocation2 + $0xa0] sm:$0xff]
    %v529 = vld [vmem:[#allocation2 + $0xa8] sm:$0xff]
    %v530 = vld [vmem:[#allocation2 + $0xb0] sm:$0xff]
    %v531 = vld [vmem:[#allocation2 + $0xb8] sm:$0xff]
    %v532 = vld [vmem:[#allocation2 + $0xc0] sm:$0xff]
    %v533 = vld [vmem:[#allocation2 + $0xc8] sm:$0xff]
    %v534 = vld [vmem:[#allocation2 + $0xd0] sm:$0xff]
    %v535 = vld [vmem:[#allocation2 + $0xd8] sm:$0xff]
    %v536 = vld [vmem:[#allocation2 + $0xe0] sm:$0xff]
    %v537 = vld [vmem:[#allocation2 + $0xe8] sm:$0xff]
    %v538 = vld [vmem:[#allocation2 + $0xf0] sm:$0xff]
    %v539 = vld [vmem:[#allocation2 + $0xf8] sm:$0xff]
    %v540 = vld [vmem:[%s45 + $0x80] sm:$0xff]
    %v541 = vld [vmem:[%s45 + $0x88] sm:$0xff]
    %v542 = vld [vmem:[%s45 + $0x90] sm:$0xff]
    %v543 = vld [vmem:[%s45 + $0x98] sm:$0xff]
    %v544 = vld [vmem:[%s45 + $0xa0] sm:$0xff]
    %v545 = vld [vmem:[%s45 + $0xa8] sm:$0xff]
    %v546 = vld [vmem:[%s45 + $0xb0] sm:$0xff]
    %v547 = vld [vmem:[%s45 + $0xb8] sm:$0xff]
    %v548 = vld [vmem:[%s45 + $0xc0] sm:$0xff]
    %v549 = vld [vmem:[%s45 + $0xc8] sm:$0xff]
    %v550 = vld [vmem:[%s45 + $0xd0] sm:$0xff]
    %v551 = vld [vmem:[%s45 + $0xd8] sm:$0xff]
    %v552 = vld [vmem:[%s45 + $0xe0] sm:$0xff]
    %v553 = vld [vmem:[%s45 + $0xe8] sm:$0xff]
    %v554 = vld [vmem:[%s45 + $0xf0] sm:$0xff]
    %v555 = vld [vmem:[%s45 + $0xf8] sm:$0xff]
    %v556 = vpack.c.bf16 %v523, %v523
    %v557 = vunpack.c.l.bf16 %v556
    %v558 = vsub.f32 %v523, %v557
    %559 = vmatpush.msra.mxu0 %v539
    %560 = vmatpush.msra.mxu0 %v538
    %561 = vmatpush.msra.mxu0 %v537
    %562 = vmatpush.msra.mxu0 %v536
    %563 = vmatpush.msra.mxu0 %v535
    %564 = vmatpush.msra.mxu0 %v534
    %565 = vmatpush.msra.mxu0 %v533
    %566 = vmatpush.msra.mxu0 %v532
    %567 = vmatpush.msra.mxu0 %v531
    %568 = vmatpush.msra.mxu0 %v530
    %569 = vmatpush.msra.mxu0 %v529
    %570 = vmatpush.msra.mxu0 %v528
    %571 = vmatpush.msra.mxu0 %v527
    %572 = vmatpush.msra.mxu0 %v526
    %573 = vmatpush.msra.mxu0 %v525
    %574 = vmatpush.msra.mxu0 %v524
    %575 = vmatmul.f32.gmra.mxu0 %v557
    %v576 = vpop.f32.mrf.mxu0
    %v577 = vadd.f32 0.0, %v576
    %578 = vdwg.mxu0
    %v579 = vadd.f32 %v522, %v577
    %580 = vmatpush.msra.mxu0 %v539
    %581 = vmatpush.msra.mxu0 %v538
    %582 = vmatpush.msra.mxu0 %v537
    %583 = vmatpush.msra.mxu0 %v536
    %584 = vmatpush.msra.mxu0 %v535
    %585 = vmatpush.msra.mxu0 %v534
    %586 = vmatpush.msra.mxu0 %v533
    %587 = vmatpush.msra.mxu0 %v532
    %588 = vmatpush.msra.mxu0 %v531
    %589 = vmatpush.msra.mxu0 %v530
    %590 = vmatpush.msra.mxu0 %v529
    %591 = vmatpush.msra.mxu0 %v528
    %592 = vmatpush.msra.mxu0 %v527
    %593 = vmatpush.msra.mxu0 %v526
    %594 = vmatpush.msra.mxu0 %v525
    %595 = vmatpush.msra.mxu0 %v524
    %596 = vmatmul.f32.gmra.mxu0 %v558
    %v597 = vpop.f32.mrf.mxu0
    %v598 = vadd.f32 0.0, %v597
    %599 = vdwg.mxu0
    %v600 = vadd.f32 %v579, %v598
    %601 = vmatpush.msra.mxu0 %v555
    %602 = vmatpush.msra.mxu0 %v554
    %603 = vmatpush.msra.mxu0 %v553
    %604 = vmatpush.msra.mxu0 %v552
    %605 = vmatpush.msra.mxu0 %v551
    %606 = vmatpush.msra.mxu0 %v550
    %607 = vmatpush.msra.mxu0 %v549
    %608 = vmatpush.msra.mxu0 %v548
    %609 = vmatpush.msra.mxu0 %v547
    %610 = vmatpush.msra.mxu0 %v546
    %611 = vmatpush.msra.mxu0 %v545
    %612 = vmatpush.msra.mxu0 %v544
    %613 = vmatpush.msra.mxu0 %v543
    %614 = vmatpush.msra.mxu0 %v542
    %615 = vmatpush.msra.mxu0 %v541
    %616 = vmatpush.msra.mxu0 %v540
    %617 = vmatmul.f32.gmra.mxu0 %v557
    %v618 = vpop.f32.mrf.mxu0
    %v619 = vadd.f32 0.0, %v618
    %620 = vdwg.mxu0
    %v621 = vadd.f32 %v600, %v619
    %s622 = scalar_lea.vmem %s0, 48
    %v623 = vld [vmem:[%s622] sm:$0xff]
    %v624 = vld [vmem:[#allocation2 + $0x100] sm:$0xff]
    %v625 = vld [vmem:[#allocation2 + $0x108] sm:$0xff]
    %v626 = vld [vmem:[#allocation2 + $0x110] sm:$0xff]
    %v627 = vld [vmem:[#allocation2 + $0x118] sm:$0xff]
    %v628 = vld [vmem:[#allocation2 + $0x120] sm:$0xff]
    %v629 = vld [vmem:[#allocation2 + $0x128] sm:$0xff]
    %v630 = vld [vmem:[#allocation2 + $0x130] sm:$0xff]
    %v631 = vld [vmem:[#allocation2 + $0x138] sm:$0xff]
    %v632 = vld [vmem:[#allocation2 + $0x140] sm:$0xff]
    %v633 = vld [vmem:[#allocation2 + $0x148] sm:$0xff]
    %v634 = vld [vmem:[#allocation2 + $0x150] sm:$0xff]
    %v635 = vld [vmem:[#allocation2 + $0x158] sm:$0xff]
    %v636 = vld [vmem:[#allocation2 + $0x160] sm:$0xff]
    %v637 = vld [vmem:[#allocation2 + $0x168] sm:$0xff]
    %v638 = vld [vmem:[#allocation2 + $0x170] sm:$0xff]
    %v639 = vld [vmem:[#allocation2 + $0x178] sm:$0xff]
    %v640 = vld [vmem:[%s45 + $0x100] sm:$0xff]
    %v641 = vld [vmem:[%s45 + $0x108] sm:$0xff]
    %v642 = vld [vmem:[%s45 + $0x110] sm:$0xff]
    %v643 = vld [vmem:[%s45 + $0x118] sm:$0xff]
    %v644 = vld [vmem:[%s45 + $0x120] sm:$0xff]
    %v645 = vld [vmem:[%s45 + $0x128] sm:$0xff]
    %v646 = vld [vmem:[%s45 + $0x130] sm:$0xff]
    %v647 = vld [vmem:[%s45 + $0x138] sm:$0xff]
    %v648 = vld [vmem:[%s45 + $0x140] sm:$0xff]
    %v649 = vld [vmem:[%s45 + $0x148] sm:$0xff]
    %v650 = vld [vmem:[%s45 + $0x150] sm:$0xff]
    %v651 = vld [vmem:[%s45 + $0x158] sm:$0xff]
    %v652 = vld [vmem:[%s45 + $0x160] sm:$0xff]
    %v653 = vld [vmem:[%s45 + $0x168] sm:$0xff]
    %v654 = vld [vmem:[%s45 + $0x170] sm:$0xff]
    %v655 = vld [vmem:[%s45 + $0x178] sm:$0xff]
    %v656 = vpack.c.bf16 %v623, %v623
    %v657 = vunpack.c.l.bf16 %v656
    %v658 = vsub.f32 %v623, %v657
    %659 = vmatpush.msra.mxu0 %v639
    %660 = vmatpush.msra.mxu0 %v638
    %661 = vmatpush.msra.mxu0 %v637
    %662 = vmatpush.msra.mxu0 %v636
    %663 = vmatpush.msra.mxu0 %v635
    %664 = vmatpush.msra.mxu0 %v634
    %665 = vmatpush.msra.mxu0 %v633
    %666 = vmatpush.msra.mxu0 %v632
    %667 = vmatpush.msra.mxu0 %v631
    %668 = vmatpush.msra.mxu0 %v630
    %669 = vmatpush.msra.mxu0 %v629
    %670 = vmatpush.msra.mxu0 %v628
    %671 = vmatpush.msra.mxu0 %v627
    %672 = vmatpush.msra.mxu0 %v626
    %673 = vmatpush.msra.mxu0 %v625
    %674 = vmatpush.msra.mxu0 %v624
    %675 = vmatmul.f32.gmra.mxu0 %v657
    %v676 = vpop.f32.mrf.mxu0
    %v677 = vadd.f32 0.0, %v676
    %678 = vdwg.mxu0
    %v679 = vadd.f32 %v621, %v677
    %680 = vmatpush.msra.mxu0 %v639
    %681 = vmatpush.msra.mxu0 %v638
    %682 = vmatpush.msra.mxu0 %v637
    %683 = vmatpush.msra.mxu0 %v636
    %684 = vmatpush.msra.mxu0 %v635
    %685 = vmatpush.msra.mxu0 %v634
    %686 = vmatpush.msra.mxu0 %v633
    %687 = vmatpush.msra.mxu0 %v632
    %688 = vmatpush.msra.mxu0 %v631
    %689 = vmatpush.msra.mxu0 %v630
    %690 = vmatpush.msra.mxu0 %v629
    %691 = vmatpush.msra.mxu0 %v628
    %692 = vmatpush.msra.mxu0 %v627
    %693 = vmatpush.msra.mxu0 %v626
    %694 = vmatpush.msra.mxu0 %v625
    %695 = vmatpush.msra.mxu0 %v624
    %696 = vmatmul.f32.gmra.mxu0 %v658
    %v697 = vpop.f32.mrf.mxu0
    %v698 = vadd.f32 0.0, %v697
    %699 = vdwg.mxu0
    %v700 = vadd.f32 %v679, %v698
    %701 = vmatpush.msra.mxu0 %v655
    %702 = vmatpush.msra.mxu0 %v654
    %703 = vmatpush.msra.mxu0 %v653
    %704 = vmatpush.msra.mxu0 %v652
    %705 = vmatpush.msra.mxu0 %v651
    %706 = vmatpush.msra.mxu0 %v650
    %707 = vmatpush.msra.mxu0 %v649
    %708 = vmatpush.msra.mxu0 %v648
    %709 = vmatpush.msra.mxu0 %v647
    %710 = vmatpush.msra.mxu0 %v646
    %711 = vmatpush.msra.mxu0 %v645
    %712 = vmatpush.msra.mxu0 %v644
    %713 = vmatpush.msra.mxu0 %v643
    %714 = vmatpush.msra.mxu0 %v642
    %715 = vmatpush.msra.mxu0 %v641
    %716 = vmatpush.msra.mxu0 %v640
    %717 = vmatmul.f32.gmra.mxu0 %v657
    %v718 = vpop.f32.mrf.mxu0
    %v719 = vadd.f32 0.0, %v718
    %720 = vdwg.mxu0
    %v721 = vadd.f32 %v700, %v719
    %v722 = vld [vmem:[%s622 + $0x1] sm:$0xff]
    %v723 = vld [vmem:[#allocation2 + $0x180] sm:$0xff]
    %v724 = vld [vmem:[#allocation2 + $0x188] sm:$0xff]
    %v725 = vld [vmem:[#allocation2 + $0x190] sm:$0xff]
    %v726 = vld [vmem:[#allocation2 + $0x198] sm:$0xff]
    %v727 = vld [vmem:[#allocation2 + $0x1a0] sm:$0xff]
    %v728 = vld [vmem:[#allocation2 + $0x1a8] sm:$0xff]
    %v729 = vld [vmem:[#allocation2 + $0x1b0] sm:$0xff]
    %v730 = vld [vmem:[#allocation2 + $0x1b8] sm:$0xff]
    %v731 = vld [vmem:[#allocation2 + $0x1c0] sm:$0xff]
    %v732 = vld [vmem:[#allocation2 + $0x1c8] sm:$0xff]
    %v733 = vld [vmem:[#allocation2 + $0x1d0] sm:$0xff]
    %v734 = vld [vmem:[#allocation2 + $0x1d8] sm:$0xff]
    %v735 = vld [vmem:[#allocation2 + $0x1e0] sm:$0xff]
    %v736 = vld [vmem:[#allocation2 + $0x1e8] sm:$0xff]
    %v737 = vld [vmem:[#allocation2 + $0x1f0] sm:$0xff]
    %v738 = vld [vmem:[#allocation2 + $0x1f8] sm:$0xff]
    %v739 = vld [vmem:[%s45 + $0x180] sm:$0xff]
    %v740 = vld [vmem:[%s45 + $0x188] sm:$0xff]
    %v741 = vld [vmem:[%s45 + $0x190] sm:$0xff]
    %v742 = vld [vmem:[%s45 + $0x198] sm:$0xff]
    %v743 = vld [vmem:[%s45 + $0x1a0] sm:$0xff]
    %v744 = vld [vmem:[%s45 + $0x1a8] sm:$0xff]
    %v745 = vld [vmem:[%s45 + $0x1b0] sm:$0xff]
    %v746 = vld [vmem:[%s45 + $0x1b8] sm:$0xff]
    %v747 = vld [vmem:[%s45 + $0x1c0] sm:$0xff]
    %v748 = vld [vmem:[%s45 + $0x1c8] sm:$0xff]
    %v749 = vld [vmem:[%s45 + $0x1d0] sm:$0xff]
    %v750 = vld [vmem:[%s45 + $0x1d8] sm:$0xff]
    %v751 = vld [vmem:[%s45 + $0x1e0] sm:$0xff]
    %v752 = vld [vmem:[%s45 + $0x1e8] sm:$0xff]
    %v753 = vld [vmem:[%s45 + $0x1f0] sm:$0xff]
    %v754 = vld [vmem:[%s45 + $0x1f8] sm:$0xff]
    %v755 = vpack.c.bf16 %v722, %v722
    %v756 = vunpack.c.l.bf16 %v755
    %v757 = vsub.f32 %v722, %v756
    %758 = vmatpush.msra.mxu0 %v738
    %759 = vmatpush.msra.mxu0 %v737
    %760 = vmatpush.msra.mxu0 %v736
    %761 = vmatpush.msra.mxu0 %v735
    %762 = vmatpush.msra.mxu0 %v734
    %763 = vmatpush.msra.mxu0 %v733
    %764 = vmatpush.msra.mxu0 %v732
    %765 = vmatpush.msra.mxu0 %v731
    %766 = vmatpush.msra.mxu0 %v730
    %767 = vmatpush.msra.mxu0 %v729
    %768 = vmatpush.msra.mxu0 %v728
    %769 = vmatpush.msra.mxu0 %v727
    %770 = vmatpush.msra.mxu0 %v726
    %771 = vmatpush.msra.mxu0 %v725
    %772 = vmatpush.msra.mxu0 %v724
    %773 = vmatpush.msra.mxu0 %v723
    %774 = vmatmul.f32.gmra.mxu0 %v756
    %v775 = vpop.f32.mrf.mxu0
    %v776 = vadd.f32 0.0, %v775
    %777 = vdwg.mxu0
    %v778 = vadd.f32 %v721, %v776
    %779 = vmatpush.msra.mxu0 %v738
    %780 = vmatpush.msra.mxu0 %v737
    %781 = vmatpush.msra.mxu0 %v736
    %782 = vmatpush.msra.mxu0 %v735
    %783 = vmatpush.msra.mxu0 %v734
    %784 = vmatpush.msra.mxu0 %v733
    %785 = vmatpush.msra.mxu0 %v732
    %786 = vmatpush.msra.mxu0 %v731
    %787 = vmatpush.msra.mxu0 %v730
    %788 = vmatpush.msra.mxu0 %v729
    %789 = vmatpush.msra.mxu0 %v728
    %790 = vmatpush.msra.mxu0 %v727
    %791 = vmatpush.msra.mxu0 %v726
    %792 = vmatpush.msra.mxu0 %v725
    %793 = vmatpush.msra.mxu0 %v724
    %794 = vmatpush.msra.mxu0 %v723
    %795 = vmatmul.f32.gmra.mxu0 %v757
    %v796 = vpop.f32.mrf.mxu0
    %v797 = vadd.f32 0.0, %v796
    %798 = vdwg.mxu0
    %v799 = vadd.f32 %v778, %v797
    %800 = vmatpush.msra.mxu0 %v754
    %801 = vmatpush.msra.mxu0 %v753
    %802 = vmatpush.msra.mxu0 %v752
    %803 = vmatpush.msra.mxu0 %v751
    %804 = vmatpush.msra.mxu0 %v750
    %805 = vmatpush.msra.mxu0 %v749
    %806 = vmatpush.msra.mxu0 %v748
    %807 = vmatpush.msra.mxu0 %v747
    %808 = vmatpush.msra.mxu0 %v746
    %809 = vmatpush.msra.mxu0 %v745
    %810 = vmatpush.msra.mxu0 %v744
    %811 = vmatpush.msra.mxu0 %v743
    %812 = vmatpush.msra.mxu0 %v742
    %813 = vmatpush.msra.mxu0 %v741
    %814 = vmatpush.msra.mxu0 %v740
    %815 = vmatpush.msra.mxu0 %v739
    %816 = vmatmul.f32.gmra.mxu0 %v756
    %v817 = vpop.f32.mrf.mxu0
    %v818 = vadd.f32 0.0, %v817
    %819 = vdwg.mxu0
    %v820 = vadd.f32 %v799, %v818
    %s821 = scalar_lea.vmem [#allocation5], 8
    %822 = vst [vmem:[%s821] sm:$0xff] %v820
    // Predicated region
    $region14: #{tpu_custom_call.1} parent=1 // pred_check
      _
    $region15: #{tpu_custom_call.1} parent=1 // pred_check_branch
      %824 = sbr.rel (0) target = $region17
    $region16: #{tpu_custom_call.1} parent=1 // pred_region
      %826 = vsyncadd [#allocation4], 0
      %s827 = sshll.u32 [#allocation5], 4
      %s828 = int_to_ptr.vmem [resolvable:$true] %s827
      %s829 = sshll.u32 %s2, 4
      %s830 = int_to_ptr.hbm [resolvable:$true] %s829
      %835 = dma.vmem_to_hbm [thread:$0]  %s828, 256, %s830, [#allocation4], 128, 128, 8
    $region17: #{tpu_custom_call.1} parent=1 // pred_fallthru
      _
    // Predicated region
    $region18: #{tpu_custom_call.1} parent=1 // pred_check
      _
    $region19: #{tpu_custom_call.1} parent=1 // pred_check_branch
      %837 = sbr.rel (0) target = $region21
    $region20: #{tpu_custom_call.1} parent=1 // pred_region
      %839 = dma.done [#allocation4], 256
    $region21: #{tpu_custom_call.1} parent=1 // pred_fallthru
      _
    %840 = vsyncpa [#allocation3], 1
    %841 = vsyncpa [#allocation4], 1

</llo_original>
